<compile_context>
chip_gen: v5e
topology: v5e:2x2
jax: 0.10.0
libtpu: 0.0.40
codegen_flags: <defaults>
</compile_context>

<pallas_src>
import jax
import jax.numpy as jnp
from jax.experimental import pallas as pl
from jax.experimental.pallas import tpu as pltpu

# ----------------------------- configuration -------------------------------
B = 2                          # batch
C, H, W = 4, 16, 16
IN_DIM = C * H * W             # 1024 (flattened NCHW image)
K_HALF = IN_DIM // 2           # 512
DATA_HIDDEN = 64
DATA_EMB_DIM = 32
N_LABELS = 8
LABEL_EMB_DIM = 32
N_LAYERS = 4                   # label-encoder MLP depth
LATENT_DIM = 16
EMB_DIM = DATA_EMB_DIM + LABEL_EMB_DIM      # 64
HEAD_DIM = 2 * LATENT_DIM                   # fused [mu | logvar] = 32
BN_EPS = 1e-5
HALF = 32                      # common column width of every small weight/bias
LANES = 128

# ---- single packed f32 slab, shape (SLAB_ROWS, 128), lane-dense ------------
# Weight blocks (all 32 lanes wide) packed 4-per-row-group; (row0, lane0):
DE_W2   = (0, 0)     # (64, 32)
LE_W1   = (0, 32)    # (32, 32)
LE_W2   = (32, 32)   # (32, 32)
LE_W3   = (0, 64)    # (32, 32)
HEAD_WX = (32, 64)   # (32, 32)   x_emb half of fused [mu|logvar] head
HEAD_WY = (0, 96)    # (32, 32)   y_emb half of fused head
LE_W0   = (32, 96)   # (8, 32)
# Bias / affine rows (packed across the 128 lanes):
ROW_BIAS0 = 64   # [ de_b1 (lanes 0:64) | de_b2 (64:96) | le_b0 (96:128) ]
ROW_BIAS1 = 65   # [ le_b1 (0:32) | le_b2 (32:64) | le_b3 (64:96) | head_b (96:128) ]
ROW_BIAS2 = 66   # [ gamma_x (0:32) | gamma_y (32:64) | beta_x (64:96) | beta_y (96:128) ]
SLAB_ROWS = 72   # padded to a multiple of 8 sublanes


# ------------------------------- kernel ------------------------------------
def mlc_encoder_y_kernel(x_ref, y_ref, w1_ref, slab_ref, out_ref):
    f32 = jnp.float32
    bf16 = jnp.bfloat16

    def wblk(r0, c0, rows):
        return slab_ref[r0:r0 + rows, c0:c0 + HALF]

    def brow(row, c0, width=HALF):
        return slab_ref[row:row + 1, c0:c0 + width]

    # ---- data encoder: Linear(1024,64) -> ReLU -> Linear(64,32) ----
    # de_w1 is stored bf16, lane-dense (512,128) = [W[0:512,:] | W[512:1024,:]].
    # bf16 x bf16 -> f32 accumulate: single MXU pass per half, no weight up-cast.
    xb = x_ref[...].astype(bf16)                                  # (B, 1024)
    w1 = w1_ref[...]                                              # (512, 128) bf16
    h = (jnp.dot(xb[:, :K_HALF], w1[:, :DATA_HIDDEN],
                 preferred_element_type=f32)
         + jnp.dot(xb[:, K_HALF:], w1[:, DATA_HIDDEN:],
                   preferred_element_type=f32)
         + brow(ROW_BIAS0, 0, DATA_HIDDEN))
    h = jnp.maximum(h, 0.0)
    x_emb = (jnp.dot(h, wblk(*DE_W2, DATA_HIDDEN),
                     preferred_element_type=f32) + brow(ROW_BIAS0, 64))

    # ---- label encoder: 4-layer MLP, ReLU between layers, dropout = identity ----
    # TODO(synk): build_mlp's exact activation/dropout placement is not shown in
    # the module; assumed ReLU after every hidden layer, linear final layer.
    g = y_ref[...]
    g = jnp.maximum(jnp.dot(g, wblk(*LE_W0, N_LABELS),
                            preferred_element_type=f32) + brow(ROW_BIAS0, 96), 0.0)
    g = jnp.maximum(jnp.dot(g, wblk(*LE_W1, LABEL_EMB_DIM),
                            preferred_element_type=f32) + brow(ROW_BIAS1, 0), 0.0)
    g = jnp.maximum(jnp.dot(g, wblk(*LE_W2, LABEL_EMB_DIM),
                            preferred_element_type=f32) + brow(ROW_BIAS1, 32), 0.0)
    y_emb = (jnp.dot(g, wblk(*LE_W3, LABEL_EMB_DIM),
                     preferred_element_type=f32) + brow(ROW_BIAS1, 64))

    # ---- BatchNorm1d (training-mode batch stats, biased variance), computed
    # per concat-half: stats are per-feature, so normalizing [x_emb | y_emb]
    # half-by-half is exact and the concatenated emb is never materialized. ----
    # TODO(synk): BN running-stat (momentum=0.01) updates are not modeled.
    def bn(e, gamma, beta):
        mean = jnp.mean(e, axis=0, keepdims=True)
        d = e - mean
        var = jnp.mean(d * d, axis=0, keepdims=True)
        return d * jax.lax.rsqrt(var + BN_EPS) * gamma + beta

    xn = bn(x_emb, brow(ROW_BIAS2, 0), brow(ROW_BIAS2, 64))
    yn = bn(y_emb, brow(ROW_BIAS2, 32), brow(ROW_BIAS2, 96))

    # ---- fused [mu | logvar] head; contraction split over the two emb halves ----
    head = (jnp.dot(xn, wblk(*HEAD_WX, DATA_EMB_DIM),
                    preferred_element_type=f32)
            + jnp.dot(yn, wblk(*HEAD_WY, LABEL_EMB_DIM),
                      preferred_element_type=f32)
            + brow(ROW_BIAS1, 96))

    # clamp(max=5) applies only to the logvar half (lanes >= LATENT_DIM)
    col = jax.lax.broadcasted_iota(jnp.int32, head.shape, 1)
    out_ref[...] = jnp.where(col >= LATENT_DIM, jnp.minimum(head, 5.0), head)


# ------------------------------- wrapper ------------------------------------
@jax.jit
def mlc_encoder_y(x, y_hat, packed):
    b = x.shape[0]
    x_flat = x.reshape(b, -1).astype(jnp.float32)          # NCHW -> (B, C*H*W)
    y = y_hat.astype(jnp.float32)

    vmem = pl.BlockSpec(memory_space=pltpu.MemorySpace.VMEM)
    head = pl.pallas_call(
        mlc_encoder_y_kernel,
        out_shape=jax.ShapeDtypeStruct((b, HEAD_DIM), jnp.float32),
        in_specs=[vmem] * 4,           # 4 input DMAs: x, y, de_w1, slab
        out_specs=vmem,
    )(x_flat, y, packed["de_w1"], packed["slab"])

    return {"mu": head[:, :LATENT_DIM], "logvar": head[:, LATENT_DIM:]}


# ------------------------- parameter packing (host-side, once) --------------
def pack_params(p):
    f32 = jnp.float32

    # dominant buffer: (1024,64) -> lane-dense (512,128) bf16
    # (small numerical drift vs f32 PyTorch weights; accepted per review).
    w1 = p["de_w1"]
    de_w1_packed = jnp.concatenate([w1[:K_HALF, :], w1[K_HALF:, :]],
                                   axis=1).astype(jnp.bfloat16)
    assert de_w1_packed.shape == (K_HALF, LANES)

    # fused [mu | logvar] head
    head_w = jnp.concatenate([p["mu_w"], p["lv_w"]], axis=1)       # (64, 32)
    head_b = jnp.concatenate([p["mu_b"], p["lv_b"]], axis=1)       # (1, 32)

    slab = jnp.zeros((SLAB_ROWS, LANES), f32)

    def put(s, block, r0, c0):
        rows, cols = block.shape
        return s.at[r0:r0 + rows, c0:c0 + cols].set(block.astype(f32))

    # weights (all 32 lanes wide, packed 4 columns per row group)
    slab = put(slab, p["de_w2"], *DE_W2)
    slab = put(slab, p["le_w1"], *LE_W1)
    slab = put(slab, p["le_w2"], *LE_W2)
    slab = put(slab, p["le_w3"], *LE_W3)
    slab = put(slab, head_w[:DATA_EMB_DIM, :], *HEAD_WX)
    slab = put(slab, head_w[DATA_EMB_DIM:, :], *HEAD_WY)
    slab = put(slab, p["le_w0"], *LE_W0)
    # biases / BN affine
    slab = put(slab, p["de_b1"], ROW_BIAS0, 0)
    slab = put(slab, p["de_b2"], ROW_BIAS0, 64)
    slab = put(slab, p["le_b0"], ROW_BIAS0, 96)
    slab = put(slab, p["le_b1"], ROW_BIAS1, 0)
    slab = put(slab, p["le_b2"], ROW_BIAS1, 32)
    slab = put(slab, p["le_b3"], ROW_BIAS1, 64)
    slab = put(slab, head_b, ROW_BIAS1, 96)
    slab = put(slab, p["bn_gamma"][:, :HALF], ROW_BIAS2, 0)
    slab = put(slab, p["bn_gamma"][:, HALF:], ROW_BIAS2, 32)
    slab = put(slab, p["bn_beta"][:, :HALF], ROW_BIAS2, 64)
    slab = put(slab, p["bn_beta"][:, HALF:], ROW_BIAS2, 96)

    return {"de_w1": de_w1_packed, "slab": slab}


# ------------------------- deterministic parameters -------------------------
def init_params(key):
    def linear(key, fan_in, fan_out):
        kw, kb = jax.random.split(key)
        scale = 1.0 / jnp.sqrt(jnp.float32(fan_in))
        w = jax.random.normal(kw, (fan_in, fan_out), jnp.float32) * scale
        b = jax.random.normal(kb, (1, fan_out), jnp.float32) * 0.01
        return w, b

    keys = jax.random.split(key, 9)
    p = {}
    # data_encoder: Linear(IN_DIM, 64) -> ReLU -> Linear(64, 32)
    p["de_w1"], p["de_b1"] = linear(keys[0], IN_DIM, DATA_HIDDEN)
    p["de_w2"], p["de_b2"] = linear(keys[1], DATA_HIDDEN, DATA_EMB_DIM)
    # label_encoder: build_mlp(n_layers=4, N_LABELS, LABEL_EMB_DIM, LABEL_EMB_DIM)
    p["le_w0"], p["le_b0"] = linear(keys[2], N_LABELS, LABEL_EMB_DIM)
    p["le_w1"], p["le_b1"] = linear(keys[3], LABEL_EMB_DIM, LABEL_EMB_DIM)
    p["le_w2"], p["le_b2"] = linear(keys[4], LABEL_EMB_DIM, LABEL_EMB_DIM)
    p["le_w3"], p["le_b3"] = linear(keys[5], LABEL_EMB_DIM, LABEL_EMB_DIM)
    # BatchNorm1d affine params
    p["bn_gamma"] = jnp.ones((1, EMB_DIM), jnp.float32)
    p["bn_beta"] = jnp.zeros((1, EMB_DIM), jnp.float32)
    # mu / logvar heads
    p["mu_w"], p["mu_b"] = linear(keys[6], EMB_DIM, LATENT_DIM)
    p["lv_w"], p["lv_b"] = linear(keys[7], EMB_DIM, LATENT_DIM)
    return p


# --------------------------------- main --------------------------------------
if __name__ == "__main__":
    key = jax.random.PRNGKey(0)
    k_x, k_y, k_p = jax.random.split(key, 3)

    x = jax.random.normal(k_x, (B, C, H, W), jnp.float32)        # NCHW input
    y_hat = jax.random.uniform(k_y, (B, N_LABELS), jnp.float32)  # soft labels

    raw_params = init_params(k_p)
    packed = pack_params(raw_params)     # host-side, once: 18 tensors -> 2 buffers

    out = mlc_encoder_y(x, y_hat, packed)
    jax.block_until_ready(out)

    assert out["mu"].shape == (B, LATENT_DIM)
    assert out["logvar"].shape == (B, LATENT_DIM)
    assert bool(jnp.all(out["logvar"] <= 5.0))
    print("KERNEL_OK")
</pallas_src>

<mosaic_0001>
module attributes {stable_mosaic.version = 11 : i64} {
  func.func @mlc_encoder_y_kernel(%arg0: memref<2x1024xf32, #tpu.memory_space<vmem>>, %arg1: memref<2x8xf32, #tpu.memory_space<vmem>>, %arg2: memref<512x128xbf16, #tpu.memory_space<vmem>>, %arg3: memref<72x128xf32, #tpu.memory_space<vmem>>, %arg4: memref<2x32xf32, #tpu.memory_space<vmem>>) attributes {dimension_semantics = [], scalar_prefetch = 0 : i64, scratch_operands = 0 : i64, tpu.core_type = #tpu.core_type<tc>} {
    %c0 = arith.constant 0 : index
    %c0_0 = arith.constant 0 : index
    %0 = vector.load %arg0[%c0, %c0_0] : memref<2x1024xf32, #tpu.memory_space<vmem>>, vector<2x1024xf32>
    %1 = arith.truncf %0 : vector<2x1024xf32> to vector<2x1024xbf16>
    %c0_1 = arith.constant 0 : index
    %c0_2 = arith.constant 0 : index
    %2 = vector.load %arg2[%c0_1, %c0_2] : memref<512x128xbf16, #tpu.memory_space<vmem>>, vector<512x128xbf16>
    %3 = vector.extract_strided_slice %1 {offsets = [0, 0], sizes = [2, 512], strides = [1, 1]} : vector<2x1024xbf16> to vector<2x512xbf16>
    %4 = vector.extract_strided_slice %2 {offsets = [0, 0], sizes = [512, 64], strides = [1, 1]} : vector<512x128xbf16> to vector<512x64xbf16>
    %cst = arith.constant dense<0.000000e+00> : vector<2x64xf32>
    %5 = tpu.matmul %3, %4, %cst {dimension_numbers = #tpu.dot_dimension_numbers<[1], [0], [0], [1], [0, 0, 1, 1], [], []>} : vector<2x512xbf16>, vector<512x64xbf16>, vector<2x64xf32> -> vector<2x64xf32>
    %6 = vector.extract_strided_slice %1 {offsets = [0, 512], sizes = [2, 512], strides = [1, 1]} : vector<2x1024xbf16> to vector<2x512xbf16>
    %7 = vector.extract_strided_slice %2 {offsets = [0, 64], sizes = [512, 64], strides = [1, 1]} : vector<512x128xbf16> to vector<512x64xbf16>
    %cst_3 = arith.constant dense<0.000000e+00> : vector<2x64xf32>
    %8 = tpu.matmul %6, %7, %cst_3 {dimension_numbers = #tpu.dot_dimension_numbers<[1], [0], [0], [1], [0, 0, 1, 1], [], []>} : vector<2x512xbf16>, vector<512x64xbf16>, vector<2x64xf32> -> vector<2x64xf32>
    %9 = arith.addf %5, %8 : vector<2x64xf32>
    %c64 = arith.constant 64 : index
    %c0_4 = arith.constant 0 : index
    %10 = vector.load %arg3[%c64, %c0_4] : memref<72x128xf32, #tpu.memory_space<vmem>>, vector<1x64xf32>
    %11 = vector.broadcast %10 : vector<1x64xf32> to vector<2x64xf32>
    %12 = arith.addf %9, %11 : vector<2x64xf32>
    %cst_5 = arith.constant 0.000000e+00 : f32
    %13 = vector.broadcast %cst_5 : f32 to vector<2x64xf32>
    %14 = arith.maximumf %12, %13 : vector<2x64xf32>
    %c0_6 = arith.constant 0 : index
    %c0_7 = arith.constant 0 : index
    %15 = vector.load %arg3[%c0_6, %c0_7] : memref<72x128xf32, #tpu.memory_space<vmem>>, vector<64x32xf32>
    %cst_8 = arith.constant dense<0.000000e+00> : vector<2x32xf32>
    %16 = tpu.matmul %14, %15, %cst_8 {dimension_numbers = #tpu.dot_dimension_numbers<[1], [0], [0], [1], [0, 0, 1, 1], [], []>} : vector<2x64xf32>, vector<64x32xf32>, vector<2x32xf32> -> vector<2x32xf32>
    %c64_9 = arith.constant 64 : index
    %c64_10 = arith.constant 64 : index
    %17 = vector.load %arg3[%c64_9, %c64_10] : memref<72x128xf32, #tpu.memory_space<vmem>>, vector<1x32xf32>
    %18 = vector.broadcast %17 : vector<1x32xf32> to vector<2x32xf32>
    %19 = arith.addf %16, %18 : vector<2x32xf32>
    %c0_11 = arith.constant 0 : index
    %c0_12 = arith.constant 0 : index
    %20 = vector.load %arg1[%c0_11, %c0_12] : memref<2x8xf32, #tpu.memory_space<vmem>>, vector<2x8xf32>
    %c32 = arith.constant 32 : index
    %c96 = arith.constant 96 : index
    %21 = vector.load %arg3[%c32, %c96] : memref<72x128xf32, #tpu.memory_space<vmem>>, vector<8x32xf32>
    %cst_13 = arith.constant dense<0.000000e+00> : vector<2x32xf32>
    %22 = tpu.matmul %20, %21, %cst_13 {dimension_numbers = #tpu.dot_dimension_numbers<[1], [0], [0], [1], [0, 0, 1, 1], [], []>} : vector<2x8xf32>, vector<8x32xf32>, vector<2x32xf32> -> vector<2x32xf32>
    %c64_14 = arith.constant 64 : index
    %c96_15 = arith.constant 96 : index
    %23 = vector.load %arg3[%c64_14, %c96_15] : memref<72x128xf32, #tpu.memory_space<vmem>>, vector<1x32xf32>
    %24 = vector.broadcast %23 : vector<1x32xf32> to vector<2x32xf32>
    %25 = arith.addf %22, %24 : vector<2x32xf32>
    %cst_16 = arith.constant 0.000000e+00 : f32
    %26 = vector.broadcast %cst_16 : f32 to vector<2x32xf32>
    %27 = arith.maximumf %25, %26 : vector<2x32xf32>
    %c0_17 = arith.constant 0 : index
    %c32_18 = arith.constant 32 : index
    %28 = vector.load %arg3[%c0_17, %c32_18] : memref<72x128xf32, #tpu.memory_space<vmem>>, vector<32x32xf32>
    %cst_19 = arith.constant dense<0.000000e+00> : vector<2x32xf32>
    %29 = tpu.matmul %27, %28, %cst_19 {dimension_numbers = #tpu.dot_dimension_numbers<[1], [0], [0], [1], [0, 0, 1, 1], [], []>} : vector<2x32xf32>, vector<32x32xf32>, vector<2x32xf32> -> vector<2x32xf32>
    %c65 = arith.constant 65 : index
    %c0_20 = arith.constant 0 : index
    %30 = vector.load %arg3[%c65, %c0_20] : memref<72x128xf32, #tpu.memory_space<vmem>>, vector<1x32xf32>
    %31 = vector.broadcast %30 : vector<1x32xf32> to vector<2x32xf32>
    %32 = arith.addf %29, %31 : vector<2x32xf32>
    %cst_21 = arith.constant 0.000000e+00 : f32
    %33 = vector.broadcast %cst_21 : f32 to vector<2x32xf32>
    %34 = arith.maximumf %32, %33 : vector<2x32xf32>
    %c32_22 = arith.constant 32 : index
    %c32_23 = arith.constant 32 : index
    %35 = vector.load %arg3[%c32_22, %c32_23] : memref<72x128xf32, #tpu.memory_space<vmem>>, vector<32x32xf32>
    %cst_24 = arith.constant dense<0.000000e+00> : vector<2x32xf32>
    %36 = tpu.matmul %34, %35, %cst_24 {dimension_numbers = #tpu.dot_dimension_numbers<[1], [0], [0], [1], [0, 0, 1, 1], [], []>} : vector<2x32xf32>, vector<32x32xf32>, vector<2x32xf32> -> vector<2x32xf32>
    %c65_25 = arith.constant 65 : index
    %c32_26 = arith.constant 32 : index
    %37 = vector.load %arg3[%c65_25, %c32_26] : memref<72x128xf32, #tpu.memory_space<vmem>>, vector<1x32xf32>
    %38 = vector.broadcast %37 : vector<1x32xf32> to vector<2x32xf32>
    %39 = arith.addf %36, %38 : vector<2x32xf32>
    %cst_27 = arith.constant 0.000000e+00 : f32
    %40 = vector.broadcast %cst_27 : f32 to vector<2x32xf32>
    %41 = arith.maximumf %39, %40 : vector<2x32xf32>
    %c0_28 = arith.constant 0 : index
    %c64_29 = arith.constant 64 : index
    %42 = vector.load %arg3[%c0_28, %c64_29] : memref<72x128xf32, #tpu.memory_space<vmem>>, vector<32x32xf32>
    %cst_30 = arith.constant dense<0.000000e+00> : vector<2x32xf32>
    %43 = tpu.matmul %41, %42, %cst_30 {dimension_numbers = #tpu.dot_dimension_numbers<[1], [0], [0], [1], [0, 0, 1, 1], [], []>} : vector<2x32xf32>, vector<32x32xf32>, vector<2x32xf32> -> vector<2x32xf32>
    %c65_31 = arith.constant 65 : index
    %c64_32 = arith.constant 64 : index
    %44 = vector.load %arg3[%c65_31, %c64_32] : memref<72x128xf32, #tpu.memory_space<vmem>>, vector<1x32xf32>
    %45 = vector.broadcast %44 : vector<1x32xf32> to vector<2x32xf32>
    %46 = arith.addf %43, %45 : vector<2x32xf32>
    %c66 = arith.constant 66 : index
    %c0_33 = arith.constant 0 : index
    %47 = vector.load %arg3[%c66, %c0_33] : memref<72x128xf32, #tpu.memory_space<vmem>>, vector<1x32xf32>
    %c66_34 = arith.constant 66 : index
    %c64_35 = arith.constant 64 : index
    %48 = vector.load %arg3[%c66_34, %c64_35] : memref<72x128xf32, #tpu.memory_space<vmem>>, vector<1x32xf32>
    %cst_36 = arith.constant dense<0.000000e+00> : vector<32xf32>
    %49 = vector.multi_reduction <add>, %19, %cst_36 [0] : vector<2x32xf32> to vector<32xf32>
    %50 = vector.shape_cast %49 : vector<32xf32> to vector<1x32xf32>
    %cst_37 = arith.constant 2.000000e+00 : f32
    %51 = vector.broadcast %cst_37 : f32 to vector<1x32xf32>
    %52 = arith.divf %50, %51 : vector<1x32xf32>
    %53 = vector.broadcast %52 : vector<1x32xf32> to vector<2x32xf32>
    %54 = arith.subf %19, %53 : vector<2x32xf32>
    %55 = arith.mulf %54, %54 : vector<2x32xf32>
    %cst_38 = arith.constant dense<0.000000e+00> : vector<32xf32>
    %56 = vector.multi_reduction <add>, %55, %cst_38 [0] : vector<2x32xf32> to vector<32xf32>
    %57 = vector.shape_cast %56 : vector<32xf32> to vector<1x32xf32>
    %cst_39 = arith.constant 2.000000e+00 : f32
    %58 = vector.broadcast %cst_39 : f32 to vector<1x32xf32>
    %59 = arith.divf %57, %58 : vector<1x32xf32>
    %cst_40 = arith.constant 9.99999974E-6 : f32
    %60 = vector.broadcast %cst_40 : f32 to vector<1x32xf32>
    %61 = arith.addf %59, %60 : vector<1x32xf32>
    %62 = math.rsqrt %61 : vector<1x32xf32>
    %63 = vector.broadcast %62 : vector<1x32xf32> to vector<2x32xf32>
    %64 = arith.mulf %54, %63 : vector<2x32xf32>
    %65 = vector.broadcast %47 : vector<1x32xf32> to vector<2x32xf32>
    %66 = arith.mulf %64, %65 : vector<2x32xf32>
    %67 = vector.broadcast %48 : vector<1x32xf32> to vector<2x32xf32>
    %68 = arith.addf %66, %67 : vector<2x32xf32>
    %c66_41 = arith.constant 66 : index
    %c32_42 = arith.constant 32 : index
    %69 = vector.load %arg3[%c66_41, %c32_42] : memref<72x128xf32, #tpu.memory_space<vmem>>, vector<1x32xf32>
    %c66_43 = arith.constant 66 : index
    %c96_44 = arith.constant 96 : index
    %70 = vector.load %arg3[%c66_43, %c96_44] : memref<72x128xf32, #tpu.memory_space<vmem>>, vector<1x32xf32>
    %cst_45 = arith.constant dense<0.000000e+00> : vector<32xf32>
    %71 = vector.multi_reduction <add>, %46, %cst_45 [0] : vector<2x32xf32> to vector<32xf32>
    %72 = vector.shape_cast %71 : vector<32xf32> to vector<1x32xf32>
    %cst_46 = arith.constant 2.000000e+00 : f32
    %73 = vector.broadcast %cst_46 : f32 to vector<1x32xf32>
    %74 = arith.divf %72, %73 : vector<1x32xf32>
    %75 = vector.broadcast %74 : vector<1x32xf32> to vector<2x32xf32>
    %76 = arith.subf %46, %75 : vector<2x32xf32>
    %77 = arith.mulf %76, %76 : vector<2x32xf32>
    %cst_47 = arith.constant dense<0.000000e+00> : vector<32xf32>
    %78 = vector.multi_reduction <add>, %77, %cst_47 [0] : vector<2x32xf32> to vector<32xf32>
    %79 = vector.shape_cast %78 : vector<32xf32> to vector<1x32xf32>
    %cst_48 = arith.constant 2.000000e+00 : f32
    %80 = vector.broadcast %cst_48 : f32 to vector<1x32xf32>
    %81 = arith.divf %79, %80 : vector<1x32xf32>
    %cst_49 = arith.constant 9.99999974E-6 : f32
    %82 = vector.broadcast %cst_49 : f32 to vector<1x32xf32>
    %83 = arith.addf %81, %82 : vector<1x32xf32>
    %84 = math.rsqrt %83 : vector<1x32xf32>
    %85 = vector.broadcast %84 : vector<1x32xf32> to vector<2x32xf32>
    %86 = arith.mulf %76, %85 : vector<2x32xf32>
    %87 = vector.broadcast %69 : vector<1x32xf32> to vector<2x32xf32>
    %88 = arith.mulf %86, %87 : vector<2x32xf32>
    %89 = vector.broadcast %70 : vector<1x32xf32> to vector<2x32xf32>
    %90 = arith.addf %88, %89 : vector<2x32xf32>
    %c32_50 = arith.constant 32 : index
    %c64_51 = arith.constant 64 : index
    %91 = vector.load %arg3[%c32_50, %c64_51] : memref<72x128xf32, #tpu.memory_space<vmem>>, vector<32x32xf32>
    %cst_52 = arith.constant dense<0.000000e+00> : vector<2x32xf32>
    %92 = tpu.matmul %68, %91, %cst_52 {dimension_numbers = #tpu.dot_dimension_numbers<[1], [0], [0], [1], [0, 0, 1, 1], [], []>} : vector<2x32xf32>, vector<32x32xf32>, vector<2x32xf32> -> vector<2x32xf32>
    %c0_53 = arith.constant 0 : index
    %c96_54 = arith.constant 96 : index
    %93 = vector.load %arg3[%c0_53, %c96_54] : memref<72x128xf32, #tpu.memory_space<vmem>>, vector<32x32xf32>
    %cst_55 = arith.constant dense<0.000000e+00> : vector<2x32xf32>
    %94 = tpu.matmul %90, %93, %cst_55 {dimension_numbers = #tpu.dot_dimension_numbers<[1], [0], [0], [1], [0, 0, 1, 1], [], []>} : vector<2x32xf32>, vector<32x32xf32>, vector<2x32xf32> -> vector<2x32xf32>
    %95 = arith.addf %92, %94 : vector<2x32xf32>
    %c65_56 = arith.constant 65 : index
    %c96_57 = arith.constant 96 : index
    %96 = vector.load %arg3[%c65_56, %c96_57] : memref<72x128xf32, #tpu.memory_space<vmem>>, vector<1x32xf32>
    %97 = vector.broadcast %96 : vector<1x32xf32> to vector<2x32xf32>
    %98 = arith.addf %95, %97 : vector<2x32xf32>
    %99 = tpu.iota {dimensions = array<i32: 1>} : vector<2x32xi32>
    %c16_i32 = arith.constant 16 : i32
    %100 = vector.broadcast %c16_i32 : i32 to vector<2x32xi32>
    %101 = arith.cmpi sge, %99, %100 : vector<2x32xi32>
    %cst_58 = arith.constant 5.000000e+00 : f32
    %102 = vector.broadcast %cst_58 : f32 to vector<2x32xf32>
    %103 = arith.minimumf %98, %102 : vector<2x32xf32>
    %104 = arith.select %101, %103, %98 : vector<2x32xi1>, vector<2x32xf32>
    %c0_59 = arith.constant 0 : index
    %c0_60 = arith.constant 0 : index
    %105 = vector.load %arg4[%c0_59, %c0_60] : memref<2x32xf32, #tpu.memory_space<vmem>>, vector<2x32xf32>
    tpu.vector_store %arg4[%c0_59, %c0_60], %104 {strides = array<i32>} : memref<2x32xf32, #tpu.memory_space<vmem>>, vector<2x32xf32>,
    return
  }
}

</mosaic_0001>

<llo_original>
// kernel: mlc_encoder_y.1
$region0: #{mlc_encoder_y.1}
  #allocation0 [shape = 'u32[]', space=smem, size = 0x4, offset = 0x4, fixed_abs, tag = 'smem constant byte address 0x4 - core index']
  #allocation1 [shape = 'u32[72,128]{1,0:T(1,128)}', space=vmem, size = 0x9000, scoped, tag = 'internal scratch']
  %s0 = inlined_call_operand.vmem [shape: f32[2,1024], index: 0, kind: input, shape index: {}]
  %s1 = inlined_call_operand.vmem [shape: f32[2,8], index: 1, kind: input, shape index: {}]
  %s2 = inlined_call_operand.hbm [shape: bf16[512,128], index: 2, kind: input, shape index: {}]
  %s3 = inlined_call_operand.vmem [shape: f32[72,128], index: 3, kind: input, shape index: {}]
  %s4 = inlined_call_operand.vmem [shape: f32[2,32], index: 4, kind: output, shape index: {}]
  %s5 = sld [smem:[#allocation0]]
  $region30: #{mlc_encoder_y.1} parent=0
    _
  %s7 = ssub.s32 1, %s5
  %s8 = scalar_select 0, %s7, %s5
  $region1: #{mlc_encoder_y.1} parent=0
    #allocation2 [shape = 'u8[131072]{0}', space=vmem, size = 0x20000, scoped, tag = 'input window, operand 2, single buffered']
    #allocation3 [shape = 's32[1]{0}', space=sflag, size = 0x4, scoped, tag = 'scoped memory for mlc_encoder_y.1']
    %9 = vsyncpa [#allocation3], 0
    // Predicated region
    $region2: #{mlc_encoder_y.1} parent=1 // pred_check
      _
    $region3: #{mlc_encoder_y.1} parent=1 // pred_check_branch
      %11 = sbr.rel (0) target = $region5
    $region4: #{mlc_encoder_y.1} parent=1 // pred_region
      _
    $region5: #{mlc_encoder_y.1} parent=1 // pred_fallthru
      _
    // Predicated region
    $region6: #{mlc_encoder_y.1} parent=1 // pred_check
      _
    $region7: #{mlc_encoder_y.1} parent=1 // pred_check_branch
      %13 = sbr.rel (0) target = $region9
    $region8: #{mlc_encoder_y.1} parent=1 // pred_region
      _
    $region9: #{mlc_encoder_y.1} parent=1 // pred_fallthru
      _
    // Predicated region
    $region10: #{mlc_encoder_y.1} parent=1 // pred_check
      _
    $region11: #{mlc_encoder_y.1} parent=1 // pred_check_branch
      %15 = sbr.rel (0) target = $region13
    $region12: #{mlc_encoder_y.1} parent=1 // pred_region
      %17 = vsyncadd [#allocation3], 0
      %s18 = sshll.u32 %s2, 4
      %s19 = int_to_ptr.hbm [resolvable:$true] %s18
      %s20 = sshll.u32 [#allocation2], 4
      %s21 = int_to_ptr.vmem [resolvable:$true] %s20
      %26 = dma.hbm_to_vmem [thread:$0]  %s19, 4096, %s21, [#allocation3], 64, 64, 4
    $region13: #{mlc_encoder_y.1} parent=1 // pred_fallthru
      _
    // Predicated region
    $region14: #{mlc_encoder_y.1} parent=1 // pred_check
      _
    $region15: #{mlc_encoder_y.1} parent=1 // pred_check_branch
      %28 = sbr.rel (0) target = $region17
    $region16: #{mlc_encoder_y.1} parent=1 // pred_region
      _
    $region17: #{mlc_encoder_y.1} parent=1 // pred_fallthru
      _
    // Predicated region
    $region18: #{mlc_encoder_y.1} parent=1 // pred_check
      _
    $region19: #{mlc_encoder_y.1} parent=1 // pred_check_branch
      %30 = sbr.rel (0) target = $region21
    $region20: #{mlc_encoder_y.1} parent=1 // pred_region
      %32 = dma.done [#allocation3], 4096
    $region21: #{mlc_encoder_y.1} parent=1 // pred_fallthru
      _
    %v33 = vld [vmem:[%s0] sm:$0xff]
    %v34 = vld [vmem:[%s0 + $0x8] sm:$0xff]
    %37 = vst [vmem:[#allocation1] ss:$4 sm:$0xff] %v33
    %s38 = scalar_lea.vmem [#allocation1], 32
    %39 = vst [vmem:[%s38] ss:$4 sm:$0xff] %v34
    %v40 = vld.sshfl [vmem:[#allocation1] sm:$0xff pattern:$0x73625140]
    %v41 = vld.sshfl [vmem:[#allocation1 + $0x8] sm:$0xff pattern:$0x73625140]
    %v42 = vld.sshfl [vmem:[#allocation1 + $0x10] sm:$0xff pattern:$0x73625140]
    %v43 = vld.sshfl [vmem:[#allocation1 + $0x18] sm:$0xff pattern:$0x73625140]
    %v44 = vld.sshfl [vmem:[#allocation1 + $0x20] sm:$0xff pattern:$0x73625140]
    %v45 = vld.sshfl [vmem:[#allocation1 + $0x28] sm:$0xff pattern:$0x73625140]
    %v46 = vld.sshfl [vmem:[#allocation1 + $0x30] sm:$0xff pattern:$0x73625140]
    %v47 = vld.sshfl [vmem:[#allocation1 + $0x38] sm:$0xff pattern:$0x73625140]
    %v56 = vpack.c.bf16 %v41, %v40
    %v57 = vpack.c.bf16 %v43, %v42
    %v58 = vpack.c.bf16 %v45, %v44
    %v59 = vpack.c.bf16 %v47, %v46
    %v60 = vld [vmem:[#allocation2] sm:$0xf]
    %v61 = vld [vmem:[#allocation2 + $0x4] sm:$0xf]
    %v62 = vld [vmem:[#allocation2 + $0x8] sm:$0xf]
    %v63 = vld [vmem:[#allocation2 + $0xc] sm:$0xf]
    %v64 = vld [vmem:[#allocation2 + $0x10] sm:$0xf]
    %v65 = vld [vmem:[#allocation2 + $0x14] sm:$0xf]
    %v66 = vld [vmem:[#allocation2 + $0x18] sm:$0xf]
    %v67 = vld [vmem:[#allocation2 + $0x1c] sm:$0xf]
    %v68 = vld [vmem:[#allocation2 + $0x20] sm:$0xf]
    %v69 = vld [vmem:[#allocation2 + $0x24] sm:$0xf]
    %v70 = vld [vmem:[#allocation2 + $0x28] sm:$0xf]
    %v71 = vld [vmem:[#allocation2 + $0x2c] sm:$0xf]
    %v72 = vld [vmem:[#allocation2 + $0x30] sm:$0xf]
    %v73 = vld [vmem:[#allocation2 + $0x34] sm:$0xf]
    %v74 = vld [vmem:[#allocation2 + $0x38] sm:$0xf]
    %v75 = vld [vmem:[#allocation2 + $0x3c] sm:$0xf]
    %v76 = vld [vmem:[#allocation2 + $0x40] sm:$0xf]
    %v77 = vld [vmem:[#allocation2 + $0x44] sm:$0xf]
    %v78 = vld [vmem:[#allocation2 + $0x48] sm:$0xf]
    %v79 = vld [vmem:[#allocation2 + $0x4c] sm:$0xf]
    %v80 = vld [vmem:[#allocation2 + $0x50] sm:$0xf]
    %v81 = vld [vmem:[#allocation2 + $0x54] sm:$0xf]
    %v82 = vld [vmem:[#allocation2 + $0x58] sm:$0xf]
    %v83 = vld [vmem:[#allocation2 + $0x5c] sm:$0xf]
    %v84 = vld [vmem:[#allocation2 + $0x60] sm:$0xf]
    %v85 = vld [vmem:[#allocation2 + $0x64] sm:$0xf]
    %v86 = vld [vmem:[#allocation2 + $0x68] sm:$0xf]
    %v87 = vld [vmem:[#allocation2 + $0x6c] sm:$0xf]
    %v88 = vld [vmem:[#allocation2 + $0x70] sm:$0xf]
    %v89 = vld [vmem:[#allocation2 + $0x74] sm:$0xf]
    %v90 = vld [vmem:[#allocation2 + $0x78] sm:$0xf]
    %v91 = vld [vmem:[#allocation2 + $0x7c] sm:$0xf]
    %v92 = vld [vmem:[#allocation2 + $0x80] sm:$0xf]
    %v93 = vld [vmem:[#allocation2 + $0x84] sm:$0xf]
    %v94 = vld [vmem:[#allocation2 + $0x88] sm:$0xf]
    %v95 = vld [vmem:[#allocation2 + $0x8c] sm:$0xf]
    %v96 = vld [vmem:[#allocation2 + $0x90] sm:$0xf]
    %v97 = vld [vmem:[#allocation2 + $0x94] sm:$0xf]
    %v98 = vld [vmem:[#allocation2 + $0x98] sm:$0xf]
    %v99 = vld [vmem:[#allocation2 + $0x9c] sm:$0xf]
    %v100 = vld [vmem:[#allocation2 + $0xa0] sm:$0xf]
    %v101 = vld [vmem:[#allocation2 + $0xa4] sm:$0xf]
    %v102 = vld [vmem:[#allocation2 + $0xa8] sm:$0xf]
    %v103 = vld [vmem:[#allocation2 + $0xac] sm:$0xf]
    %v104 = vld [vmem:[#allocation2 + $0xb0] sm:$0xf]
    %v105 = vld [vmem:[#allocation2 + $0xb4] sm:$0xf]
    %v106 = vld [vmem:[#allocation2 + $0xb8] sm:$0xf]
    %v107 = vld [vmem:[#allocation2 + $0xbc] sm:$0xf]
    %v108 = vld [vmem:[#allocation2 + $0xc0] sm:$0xf]
    %v109 = vld [vmem:[#allocation2 + $0xc4] sm:$0xf]
    %v110 = vld [vmem:[#allocation2 + $0xc8] sm:$0xf]
    %v111 = vld [vmem:[#allocation2 + $0xcc] sm:$0xf]
    %v112 = vld [vmem:[#allocation2 + $0xd0] sm:$0xf]
    %v113 = vld [vmem:[#allocation2 + $0xd4] sm:$0xf]
    %v114 = vld [vmem:[#allocation2 + $0xd8] sm:$0xf]
    %v115 = vld [vmem:[#allocation2 + $0xdc] sm:$0xf]
    %v116 = vld [vmem:[#allocation2 + $0xe0] sm:$0xf]
    %v117 = vld [vmem:[#allocation2 + $0xe4] sm:$0xf]
    %v118 = vld [vmem:[#allocation2 + $0xe8] sm:$0xf]
    %v119 = vld [vmem:[#allocation2 + $0xec] sm:$0xf]
    %v120 = vld [vmem:[#allocation2 + $0xf0] sm:$0xf]
    %v121 = vld [vmem:[#allocation2 + $0xf4] sm:$0xf]
    %v122 = vld [vmem:[#allocation2 + $0xf8] sm:$0xf]
    %v123 = vld [vmem:[#allocation2 + $0xfc] sm:$0xf]
    %v126 = vunpack.c.l.b16 %v58
    %v127 = vunpack.c.h.b16 %v58
    %v128 = vunpack.c.l.b16 %v59
    %v129 = vunpack.c.h.b16 %v59
    %v130 = vpack.c.b16 %v126, %v126
    %v131 = vpack.c.b16 %v127, %v127
    %v132 = vpack.c.b16 %v128, %v128
    %v133 = vpack.c.b16 %v129, %v129
    %v202 = vunpack.c.l.b16 %v60
    %v203 = vunpack.c.l.b16 %v61
    %v204 = vunpack.c.l.b16 %v62
    %v205 = vunpack.c.l.b16 %v63
    %v206 = vunpack.c.l.b16 %v64
    %v207 = vunpack.c.l.b16 %v65
    %v208 = vunpack.c.l.b16 %v66
    %v209 = vunpack.c.l.b16 %v67
    %v210 = vunpack.c.l.b16 %v68
    %v211 = vunpack.c.l.b16 %v69
    %v212 = vunpack.c.l.b16 %v70
    %v213 = vunpack.c.l.b16 %v71
    %v214 = vunpack.c.l.b16 %v72
    %v215 = vunpack.c.l.b16 %v73
    %v216 = vunpack.c.l.b16 %v74
    %v217 = vunpack.c.l.b16 %v75
    %v218 = vunpack.c.l.b16 %v76
    %v219 = vunpack.c.l.b16 %v77
    %v220 = vunpack.c.l.b16 %v78
    %v221 = vunpack.c.l.b16 %v79
    %v222 = vunpack.c.l.b16 %v80
    %v223 = vunpack.c.l.b16 %v81
    %v224 = vunpack.c.l.b16 %v82
    %v225 = vunpack.c.l.b16 %v83
    %v226 = vunpack.c.l.b16 %v84
    %v227 = vunpack.c.l.b16 %v85
    %v228 = vunpack.c.l.b16 %v86
    %v229 = vunpack.c.l.b16 %v87
    %v230 = vunpack.c.l.b16 %v88
    %v231 = vunpack.c.l.b16 %v89
    %v232 = vunpack.c.l.b16 %v90
    %v233 = vunpack.c.l.b16 %v91
    %v234 = vunpack.c.l.b16 %v92
    %v235 = vunpack.c.l.b16 %v93
    %v236 = vunpack.c.l.b16 %v94
    %v237 = vunpack.c.l.b16 %v95
    %v238 = vunpack.c.l.b16 %v96
    %v239 = vunpack.c.l.b16 %v97
    %v240 = vunpack.c.l.b16 %v98
    %v241 = vunpack.c.l.b16 %v99
    %v242 = vunpack.c.l.b16 %v100
    %v243 = vunpack.c.l.b16 %v101
    %v244 = vunpack.c.l.b16 %v102
    %v245 = vunpack.c.l.b16 %v103
    %v246 = vunpack.c.l.b16 %v104
    %v247 = vunpack.c.l.b16 %v105
    %v248 = vunpack.c.l.b16 %v106
    %v249 = vunpack.c.l.b16 %v107
    %v250 = vunpack.c.l.b16 %v108
    %v251 = vunpack.c.l.b16 %v109
    %v252 = vunpack.c.l.b16 %v110
    %v253 = vunpack.c.l.b16 %v111
    %v254 = vunpack.c.l.b16 %v112
    %v255 = vunpack.c.l.b16 %v113
    %v256 = vunpack.c.l.b16 %v114
    %v257 = vunpack.c.l.b16 %v115
    %v258 = vunpack.c.l.b16 %v116
    %v259 = vunpack.c.l.b16 %v117
    %v260 = vunpack.c.l.b16 %v118
    %v261 = vunpack.c.l.b16 %v119
    %v262 = vunpack.c.l.b16 %v120
    %v263 = vunpack.c.l.b16 %v121
    %v264 = vunpack.c.l.b16 %v122
    %v265 = vunpack.c.l.b16 %v123
    %v266 = vpack.c.b16 %v203, %v202
    %v267 = vpack.c.b16 %v205, %v204
    %v268 = vpack.c.b16 %v207, %v206
    %v269 = vpack.c.b16 %v209, %v208
    %v270 = vpack.c.b16 %v211, %v210
    %v271 = vpack.c.b16 %v213, %v212
    %v272 = vpack.c.b16 %v215, %v214
    %v273 = vpack.c.b16 %v217, %v216
    %v274 = vpack.c.b16 %v219, %v218
    %v275 = vpack.c.b16 %v221, %v220
    %v276 = vpack.c.b16 %v223, %v222
    %v277 = vpack.c.b16 %v225, %v224
    %v278 = vpack.c.b16 %v227, %v226
    %v279 = vpack.c.b16 %v229, %v228
    %v280 = vpack.c.b16 %v231, %v230
    %v281 = vpack.c.b16 %v233, %v232
    %v282 = vpack.c.b16 %v235, %v234
    %v283 = vpack.c.b16 %v237, %v236
    %v284 = vpack.c.b16 %v239, %v238
    %v285 = vpack.c.b16 %v241, %v240
    %v286 = vpack.c.b16 %v243, %v242
    %v287 = vpack.c.b16 %v245, %v244
    %v288 = vpack.c.b16 %v247, %v246
    %v289 = vpack.c.b16 %v249, %v248
    %v290 = vpack.c.b16 %v251, %v250
    %v291 = vpack.c.b16 %v253, %v252
    %v292 = vpack.c.b16 %v255, %v254
    %v293 = vpack.c.b16 %v257, %v256
    %v294 = vpack.c.b16 %v259, %v258
    %v295 = vpack.c.b16 %v261, %v260
    %v296 = vpack.c.b16 %v263, %v262
    %v297 = vpack.c.b16 %v265, %v264
    %298 = vrot.lane.b32.xlu0 %v266, 64
    %v299 = vpop.permute.xlu0 %298
    %300 = vrot.lane.b32.xlu0 %v267, 64
    %v301 = vpop.permute.xlu0 %300
    %302 = vrot.lane.b32.xlu0 %v268, 64
    %v303 = vpop.permute.xlu0 %302
    %304 = vrot.lane.b32.xlu0 %v269, 64
    %v305 = vpop.permute.xlu0 %304
    %306 = vrot.lane.b32.xlu0 %v270, 64
    %v307 = vpop.permute.xlu0 %306
    %308 = vrot.lane.b32.xlu0 %v271, 64
    %v309 = vpop.permute.xlu0 %308
    %310 = vrot.lane.b32.xlu0 %v272, 64
    %v311 = vpop.permute.xlu0 %310
    %312 = vrot.lane.b32.xlu0 %v273, 64
    %v313 = vpop.permute.xlu0 %312
    %314 = vrot.lane.b32.xlu0 %v274, 64
    %v315 = vpop.permute.xlu0 %314
    %316 = vrot.lane.b32.xlu0 %v275, 64
    %v317 = vpop.permute.xlu0 %316
    %318 = vrot.lane.b32.xlu0 %v276, 64
    %v319 = vpop.permute.xlu0 %318
    %320 = vrot.lane.b32.xlu0 %v277, 64
    %v321 = vpop.permute.xlu0 %320
    %322 = vrot.lane.b32.xlu0 %v278, 64
    %v323 = vpop.permute.xlu0 %322
    %324 = vrot.lane.b32.xlu0 %v279, 64
    %v325 = vpop.permute.xlu0 %324
    %326 = vrot.lane.b32.xlu0 %v280, 64
    %v327 = vpop.permute.xlu0 %326
    %328 = vrot.lane.b32.xlu0 %v281, 64
    %v329 = vpop.permute.xlu0 %328
    %330 = vrot.lane.b32.xlu0 %v282, 64
    %v331 = vpop.permute.xlu0 %330
    %332 = vrot.lane.b32.xlu0 %v283, 64
    %v333 = vpop.permute.xlu0 %332
    %334 = vrot.lane.b32.xlu0 %v284, 64
    %v335 = vpop.permute.xlu0 %334
    %336 = vrot.lane.b32.xlu0 %v285, 64
    %v337 = vpop.permute.xlu0 %336
    %338 = vrot.lane.b32.xlu0 %v286, 64
    %v339 = vpop.permute.xlu0 %338
    %340 = vrot.lane.b32.xlu0 %v287, 64
    %v341 = vpop.permute.xlu0 %340
    %342 = vrot.lane.b32.xlu0 %v288, 64
    %v343 = vpop.permute.xlu0 %342
    %344 = vrot.lane.b32.xlu0 %v289, 64
    %v345 = vpop.permute.xlu0 %344
    %346 = vrot.lane.b32.xlu0 %v290, 64
    %v347 = vpop.permute.xlu0 %346
    %348 = vrot.lane.b32.xlu0 %v291, 64
    %v349 = vpop.permute.xlu0 %348
    %350 = vrot.lane.b32.xlu0 %v292, 64
    %v351 = vpop.permute.xlu0 %350
    %352 = vrot.lane.b32.xlu0 %v293, 64
    %v353 = vpop.permute.xlu0 %352
    %354 = vrot.lane.b32.xlu0 %v294, 64
    %v355 = vpop.permute.xlu0 %354
    %356 = vrot.lane.b32.xlu0 %v295, 64
    %v357 = vpop.permute.xlu0 %356
    %358 = vrot.lane.b32.xlu0 %v296, 64
    %v359 = vpop.permute.xlu0 %358
    %360 = vrot.lane.b32.xlu0 %v297, 64
    %v361 = vpop.permute.xlu0 %360
    %394 = vmatpush.bf16.msra.mxu0 %v313
    %395 = vmatpush.bf16.msra.mxu0 %v311
    %396 = vmatpush.bf16.msra.mxu0 %v309
    %397 = vmatpush.bf16.msra.mxu0 %v307
    %398 = vmatpush.bf16.msra.mxu0 %v305
    %399 = vmatpush.bf16.msra.mxu0 %v303
    %400 = vmatpush.bf16.msra.mxu0 %v301
    %401 = vmatpush.bf16.msra.mxu0 %v299
    %402 = vmatmul.bf16.gmra.mxu0 %v130
    %v403 = vpop.f32.mrf.mxu0
    %v404 = vadd.f32 0.0, %v403
    %v405 = vpop.f32.mrf.mxu0
    %406 = vdwg.mxu0
    %407 = vmatpush.bf16.msra.mxu0 %v329
    %408 = vmatpush.bf16.msra.mxu0 %v327
    %409 = vmatpush.bf16.msra.mxu0 %v325
    %410 = vmatpush.bf16.msra.mxu0 %v323
    %411 = vmatpush.bf16.msra.mxu0 %v321
    %412 = vmatpush.bf16.msra.mxu0 %v319
    %413 = vmatpush.bf16.msra.mxu0 %v317
    %414 = vmatpush.bf16.msra.mxu0 %v315
    %415 = vmatmul.bf16.gmra.mxu0 %v131
    %v416 = vpop.f32.mrf.mxu0
    %v417 = vadd.f32 %v404, %v416
    %v418 = vpop.f32.mrf.mxu0
    %419 = vdwg.mxu0
    %420 = vmatpush.bf16.msra.mxu0 %v345
    %421 = vmatpush.bf16.msra.mxu0 %v343
    %422 = vmatpush.bf16.msra.mxu0 %v341
    %423 = vmatpush.bf16.msra.mxu0 %v339
    %424 = vmatpush.bf16.msra.mxu0 %v337
    %425 = vmatpush.bf16.msra.mxu0 %v335
    %426 = vmatpush.bf16.msra.mxu0 %v333
    %427 = vmatpush.bf16.msra.mxu0 %v331
    %428 = vmatmul.bf16.gmra.mxu0 %v132
    %v429 = vpop.f32.mrf.mxu0
    %v430 = vadd.f32 %v417, %v429
    %v431 = vpop.f32.mrf.mxu0
    %432 = vdwg.mxu0
    %433 = vmatpush.bf16.msra.mxu0 %v361
    %434 = vmatpush.bf16.msra.mxu0 %v359
    %435 = vmatpush.bf16.msra.mxu0 %v357
    %436 = vmatpush.bf16.msra.mxu0 %v355
    %437 = vmatpush.bf16.msra.mxu0 %v353
    %438 = vmatpush.bf16.msra.mxu0 %v351
    %439 = vmatpush.bf16.msra.mxu0 %v349
    %440 = vmatpush.bf16.msra.mxu0 %v347
    %441 = vmatmul.bf16.gmra.mxu0 %v133
    %v442 = vpop.f32.mrf.mxu0
    %v443 = vadd.f32 %v430, %v442
    %v444 = vpop.f32.mrf.mxu0
    %445 = vdwg.mxu0
    %v448 = vunpack.c.l.b16 %v56
    %v449 = vunpack.c.h.b16 %v56
    %v450 = vunpack.c.l.b16 %v57
    %v451 = vunpack.c.h.b16 %v57
    %v452 = vpack.c.b16 %v448, %v448
    %v453 = vpack.c.b16 %v449, %v449
    %v454 = vpack.c.b16 %v450, %v450
    %v455 = vpack.c.b16 %v451, %v451
    %492 = vmatpush.bf16.msra.mxu0 %v273
    %493 = vmatpush.bf16.msra.mxu0 %v272
    %494 = vmatpush.bf16.msra.mxu0 %v271
    %495 = vmatpush.bf16.msra.mxu0 %v270
    %496 = vmatpush.bf16.msra.mxu0 %v269
    %497 = vmatpush.bf16.msra.mxu0 %v268
    %498 = vmatpush.bf16.msra.mxu0 %v267
    %499 = vmatpush.bf16.msra.mxu0 %v266
    %500 = vmatmul.bf16.gmra.mxu0 %v452
    %v501 = vpop.f32.mrf.mxu0
    %v502 = vadd.f32 %v443, %v501
    %v503 = vpop.f32.mrf.mxu0
    %504 = vdwg.mxu0
    %505 = vmatpush.bf16.msra.mxu0 %v281
    %506 = vmatpush.bf16.msra.mxu0 %v280
    %507 = vmatpush.bf16.msra.mxu0 %v279
    %508 = vmatpush.bf16.msra.mxu0 %v278
    %509 = vmatpush.bf16.msra.mxu0 %v277
    %510 = vmatpush.bf16.msra.mxu0 %v276
    %511 = vmatpush.bf16.msra.mxu0 %v275
    %512 = vmatpush.bf16.msra.mxu0 %v274
    %513 = vmatmul.bf16.gmra.mxu0 %v453
    %v514 = vpop.f32.mrf.mxu0
    %v515 = vadd.f32 %v502, %v514
    %v516 = vpop.f32.mrf.mxu0
    %517 = vdwg.mxu0
    %518 = vmatpush.bf16.msra.mxu0 %v289
    %519 = vmatpush.bf16.msra.mxu0 %v288
    %520 = vmatpush.bf16.msra.mxu0 %v287
    %521 = vmatpush.bf16.msra.mxu0 %v286
    %522 = vmatpush.bf16.msra.mxu0 %v285
    %523 = vmatpush.bf16.msra.mxu0 %v284
    %524 = vmatpush.bf16.msra.mxu0 %v283
    %525 = vmatpush.bf16.msra.mxu0 %v282
    %526 = vmatmul.bf16.gmra.mxu0 %v454
    %v527 = vpop.f32.mrf.mxu0
    %v528 = vadd.f32 %v515, %v527
    %v529 = vpop.f32.mrf.mxu0
    %530 = vdwg.mxu0
    %531 = vmatpush.bf16.msra.mxu0 %v297
    %532 = vmatpush.bf16.msra.mxu0 %v296
    %533 = vmatpush.bf16.msra.mxu0 %v295
    %534 = vmatpush.bf16.msra.mxu0 %v294
    %535 = vmatpush.bf16.msra.mxu0 %v293
    %536 = vmatpush.bf16.msra.mxu0 %v292
    %537 = vmatpush.bf16.msra.mxu0 %v291
    %538 = vmatpush.bf16.msra.mxu0 %v290
    %539 = vmatmul.bf16.gmra.mxu0 %v455
    %v540 = vpop.f32.mrf.mxu0
    %v541 = vadd.f32 %v528, %v540
    %v542 = vpop.f32.mrf.mxu0
    %543 = vdwg.mxu0
    %v544 = vld [vmem:[%s3 + $0x40] sm:$0x1]
    %v545 = vperm.slane %v544, 0
    %v546 = vadd.f32 %v541, %v545
    %v547 = vmax.f32 %v546, 0.0
    %v548 = vld [vmem:[%s3] sm:$0xff]
    %v549 = vld [vmem:[%s3 + $0x8] sm:$0xff]
    %v550 = vld [vmem:[%s3 + $0x10] sm:$0xff]
    %v551 = vld [vmem:[%s3 + $0x18] sm:$0xff]
    %v552 = vld [vmem:[%s3 + $0x20] sm:$0xff]
    %v553 = vld [vmem:[%s3 + $0x28] sm:$0xff]
    %v554 = vld [vmem:[%s3 + $0x30] sm:$0xff]
    %v555 = vld [vmem:[%s3 + $0x38] sm:$0xff]
    %557 = vrot.lane.b32.xlu0 %v545, 64
    %v558 = vpop.permute.xlu0 %557
    %vm560 = vcmask 523264
    %v562 = vsel %vm560, %v547, 0
    %564 = vmatpush.msra.mxu0 0.0
    %565 = vmatpush.msra.mxu0 0.0
    %566 = vmatpush.msra.mxu0 0.0
    %567 = vmatpush.msra.mxu0 0.0
    %568 = vmatpush.msra.mxu0 0.0
    %569 = vmatpush.msra.mxu0 0.0
    %570 = vmatpush.msra.mxu0 0.0
    %571 = vmatpush.msra.mxu0 0.0
    %572 = vmatpush.msra.mxu0 %v555
    %573 = vmatpush.msra.mxu0 %v554
    %574 = vmatpush.msra.mxu0 %v553
    %575 = vmatpush.msra.mxu0 %v552
    %576 = vmatpush.msra.mxu0 %v551
    %577 = vmatpush.msra.mxu0 %v550
    %578 = vmatpush.msra.mxu0 %v549
    %579 = vmatpush.msra.mxu0 %v548
    %580 = vmatmul.f32.gmra.mxu0 %v562
    %v581 = vpop.f32.mrf.mxu0
    %v582 = vadd.f32 %v558, %v581
    %583 = vdwg.mxu0
    %v584 = vld [vmem:[%s1] sm:$0x3]
    %v585 = vld [vmem:[%s3 + $0x20] sm:$0xff]
    %587 = vrot.lane.b32.xlu0 %v585, 32
    %v588 = vpop.permute.xlu0 %587
    %590 = vrot.lane.b32.xlu0 %v545, 32
    %v591 = vpop.permute.xlu0 %590
    %vm593 = vcmask 64512
    %v595 = vsel %vm593, %v584, 0
    %597 = vmatpush.msra.mxu0 0.0
    %598 = vmatpush.msra.mxu0 0.0
    %599 = vmatpush.msra.mxu0 0.0
    %600 = vmatpush.msra.mxu0 0.0
    %601 = vmatpush.msra.mxu0 0.0
    %602 = vmatpush.msra.mxu0 0.0
    %603 = vmatpush.msra.mxu0 0.0
    %604 = vmatpush.msra.mxu0 0.0
    %605 = vmatpush.msra.mxu0 0.0
    %606 = vmatpush.msra.mxu0 0.0
    %607 = vmatpush.msra.mxu0 0.0
    %608 = vmatpush.msra.mxu0 0.0
    %609 = vmatpush.msra.mxu0 0.0
    %610 = vmatpush.msra.mxu0 0.0
    %611 = vmatpush.msra.mxu0 0.0
    %612 = vmatpush.msra.mxu0 %v588
    %613 = vmatmul.f32.gmra.mxu0 %v595
    %v614 = vpop.f32.mrf.mxu0
    %v615 = vadd.f32 %v591, %v614
    %616 = vdwg.mxu0
    %v617 = vmax.f32 %v615, 0.0
    %v618 = vld [vmem:[%s3] sm:$0xff]
    %v619 = vld [vmem:[%s3 + $0x8] sm:$0xff]
    %v620 = vld [vmem:[%s3 + $0x10] sm:$0xff]
    %v621 = vld [vmem:[%s3 + $0x18] sm:$0xff]
    %v622 = vld [vmem:[%s3 + $0x41] sm:$0x1]
    %v623 = vperm.slane %v622, 0
    %628 = vrot.lane.b32.xlu0 %v618, 96
    %v629 = vpop.permute.xlu0 %628
    %630 = vrot.lane.b32.xlu0 %v619, 96
    %v631 = vpop.permute.xlu0 %630
    %632 = vrot.lane.b32.xlu0 %v620, 96
    %v633 = vpop.permute.xlu0 %632
    %634 = vrot.lane.b32.xlu0 %v621, 96
    %v635 = vpop.permute.xlu0 %634
    %vm640 = vcmask 261120
    %v642 = vsel %vm640, %v617, 0
    %644 = vmatpush.msra.mxu0 0.0
    %645 = vmatpush.msra.mxu0 0.0
    %646 = vmatpush.msra.mxu0 0.0
    %647 = vmatpush.msra.mxu0 0.0
    %648 = vmatpush.msra.mxu0 0.0
    %649 = vmatpush.msra.mxu0 0.0
    %650 = vmatpush.msra.mxu0 0.0
    %651 = vmatpush.msra.mxu0 0.0
    %652 = vmatpush.msra.mxu0 0.0
    %653 = vmatpush.msra.mxu0 0.0
    %654 = vmatpush.msra.mxu0 0.0
    %655 = vmatpush.msra.mxu0 0.0
    %656 = vmatpush.msra.mxu0 %v635
    %657 = vmatpush.msra.mxu0 %v633
    %658 = vmatpush.msra.mxu0 %v631
    %659 = vmatpush.msra.mxu0 %v629
    %660 = vmatmul.f32.gmra.mxu0 %v642
    %v661 = vpop.f32.mrf.mxu0
    %v662 = vadd.f32 %v623, %v661
    %663 = vdwg.mxu0
    %v664 = vmax.f32 %v662, 0.0
    %669 = vrot.lane.b32.xlu0 %v552, 96
    %v670 = vpop.permute.xlu0 %669
    %671 = vrot.lane.b32.xlu0 %v553, 96
    %v672 = vpop.permute.xlu0 %671
    %673 = vrot.lane.b32.xlu0 %v554, 96
    %v674 = vpop.permute.xlu0 %673
    %675 = vrot.lane.b32.xlu0 %v555, 96
    %v676 = vpop.permute.xlu0 %675
    %682 = vrot.lane.b32.xlu0 %v623, 96
    %v683 = vpop.permute.xlu0 %682
    %v686 = vsel %vm640, %v664, 0
    %688 = vmatpush.msra.mxu0 0.0
    %689 = vmatpush.msra.mxu0 0.0
    %690 = vmatpush.msra.mxu0 0.0
    %691 = vmatpush.msra.mxu0 0.0
    %692 = vmatpush.msra.mxu0 0.0
    %693 = vmatpush.msra.mxu0 0.0
    %694 = vmatpush.msra.mxu0 0.0
    %695 = vmatpush.msra.mxu0 0.0
    %696 = vmatpush.msra.mxu0 0.0
    %697 = vmatpush.msra.mxu0 0.0
    %698 = vmatpush.msra.mxu0 0.0
    %699 = vmatpush.msra.mxu0 0.0
    %700 = vmatpush.msra.mxu0 %v676
    %701 = vmatpush.msra.mxu0 %v674
    %702 = vmatpush.msra.mxu0 %v672
    %703 = vmatpush.msra.mxu0 %v670
    %704 = vmatmul.f32.gmra.mxu0 %v686
    %v705 = vpop.f32.mrf.mxu0
    %v706 = vadd.f32 %v683, %v705
    %707 = vdwg.mxu0
    %v708 = vmax.f32 %v706, 0.0
    %709 = vrot.lane.b32.xlu0 %v618, 64
    %v710 = vpop.permute.xlu0 %709
    %711 = vrot.lane.b32.xlu0 %v619, 64
    %v712 = vpop.permute.xlu0 %711
    %713 = vrot.lane.b32.xlu0 %v620, 64
    %v714 = vpop.permute.xlu0 %713
    %715 = vrot.lane.b32.xlu0 %v621, 64
    %v716 = vpop.permute.xlu0 %715
    %721 = vrot.lane.b32.xlu0 %v623, 64
    %v722 = vpop.permute.xlu0 %721
    %v725 = vsel %vm640, %v708, 0
    %727 = vmatpush.msra.mxu0 0.0
    %728 = vmatpush.msra.mxu0 0.0
    %729 = vmatpush.msra.mxu0 0.0
    %730 = vmatpush.msra.mxu0 0.0
    %731 = vmatpush.msra.mxu0 0.0
    %732 = vmatpush.msra.mxu0 0.0
    %733 = vmatpush.msra.mxu0 0.0
    %734 = vmatpush.msra.mxu0 0.0
    %735 = vmatpush.msra.mxu0 0.0
    %736 = vmatpush.msra.mxu0 0.0
    %737 = vmatpush.msra.mxu0 0.0
    %738 = vmatpush.msra.mxu0 0.0
    %739 = vmatpush.msra.mxu0 %v716
    %740 = vmatpush.msra.mxu0 %v714
    %741 = vmatpush.msra.mxu0 %v712
    %742 = vmatpush.msra.mxu0 %v710
    %743 = vmatmul.f32.gmra.mxu0 %v725
    %v744 = vpop.f32.mrf.mxu0
    %v745 = vadd.f32 %v722, %v744
    %746 = vdwg.mxu0
    %v747 = vld [vmem:[%s3 + $0x42] sm:$0x1]
    %vm748 = vcmask 254976
    %v749 = vsel %vm748, %v582, 0.0
    %v750 = vrot.slane %v749, 4
    %v751 = vadd.f32 %v749, %v750
    %v752 = vrot.slane %v751, 2
    %v753 = vadd.f32 %v751, %v752
    %v754 = vrot.slane %v753, 1
    %v755 = vadd.f32 %v753, %v754
    %v756 = vrcp.pop 2.0
    %v757 = vmul.f32 2.0, %v756
    %v758 = vsub.f32 1.0, %v757
    %v759 = vmul.f32 %v756, %v758
    %v760 = vadd.f32 %v756, %v759
    %vm761 = vweird.f32 %v756
    %v762 = vsel %vm761, %v756, %v760
    %v763 = vmul.f32 %v755, %v762
    %v764 = vsub.f32 %v582, %v763
    %v765 = vmul.f32 %v764, %v764
    %v766 = vsel %vm748, %v765, 0.0
    %v767 = vrot.slane %v766, 4
    %v768 = vadd.f32 %v766, %v767
    %v769 = vrot.slane %v768, 2
    %v770 = vadd.f32 %v768, %v769
    %v771 = vrot.slane %v770, 1
    %v772 = vadd.f32 %v770, %v771
    %v773 = vmul.f32 %v772, %v762
    %v774 = vadd.f32 %v773, 1e-05
    %v775 = vrsqrt.pop %v774
    %v776 = vmul.f32 %v775, %v774
    %v777 = vmul.f32 %v776, %v775
    %v778 = vmul.f32 0.5, %v777
    %v779 = vsub.f32 1.5, %v778
    %v780 = vmul.f32 %v775, %v779
    %vm781 = vweird.f32 %v774
    %vm782 = vweird.f32 %v775
    %vm783 = vmor %vm781, %vm782
    %v784 = vsel %vm783, %v775, %v780
    %v785 = vmul.f32 %v764, %v784
    %v786 = vperm.slane %v747, 0
    %v787 = vmul.f32 %v785, %v786
    %789 = vrot.lane.b32.xlu0 %v786, 64
    %v790 = vpop.permute.xlu0 %789
    %v792 = vadd.f32 %v787, %v790
    %v793 = vsel %vm748, %v745, 0.0
    %v794 = vrot.slane %v793, 4
    %v795 = vadd.f32 %v793, %v794
    %v796 = vrot.slane %v795, 2
    %v797 = vadd.f32 %v795, %v796
    %v798 = vrot.slane %v797, 1
    %v799 = vadd.f32 %v797, %v798
    %v800 = vmul.f32 %v799, %v762
    %v801 = vsub.f32 %v745, %v800
    %v802 = vmul.f32 %v801, %v801
    %v803 = vsel %vm748, %v802, 0.0
    %v804 = vrot.slane %v803, 4
    %v805 = vadd.f32 %v803, %v804
    %v806 = vrot.slane %v805, 2
    %v807 = vadd.f32 %v805, %v806
    %v808 = vrot.slane %v807, 1
    %v809 = vadd.f32 %v807, %v808
    %v810 = vmul.f32 %v809, %v762
    %v811 = vadd.f32 %v810, 1e-05
    %v812 = vrsqrt.pop %v811
    %v813 = vmul.f32 %v812, %v811
    %v814 = vmul.f32 %v813, %v812
    %v815 = vmul.f32 0.5, %v814
    %v816 = vsub.f32 1.5, %v815
    %v817 = vmul.f32 %v812, %v816
    %vm818 = vweird.f32 %v811
    %vm819 = vweird.f32 %v812
    %vm820 = vmor %vm818, %vm819
    %v821 = vsel %vm820, %v812, %v817
    %v822 = vmul.f32 %v801, %v821
    %823 = vrot.lane.b32.xlu0 %v786, 96
    %v824 = vpop.permute.xlu0 %823
    %v826 = vmul.f32 %v822, %v824
    %827 = vrot.lane.b32.xlu0 %v786, 32
    %v828 = vpop.permute.xlu0 %827
    %v830 = vadd.f32 %v826, %v828
    %831 = vrot.lane.b32.xlu0 %v618, 32
    %v832 = vpop.permute.xlu0 %831
    %833 = vrot.lane.b32.xlu0 %v619, 32
    %v834 = vpop.permute.xlu0 %833
    %835 = vrot.lane.b32.xlu0 %v620, 32
    %v836 = vpop.permute.xlu0 %835
    %837 = vrot.lane.b32.xlu0 %v621, 32
    %v838 = vpop.permute.xlu0 %837
    %v844 = vsel %vm640, %v830, 0
    %846 = vmatpush.msra.mxu0 0.0
    %847 = vmatpush.msra.mxu0 0.0
    %848 = vmatpush.msra.mxu0 0.0
    %849 = vmatpush.msra.mxu0 0.0
    %850 = vmatpush.msra.mxu0 0.0
    %851 = vmatpush.msra.mxu0 0.0
    %852 = vmatpush.msra.mxu0 0.0
    %853 = vmatpush.msra.mxu0 0.0
    %854 = vmatpush.msra.mxu0 0.0
    %855 = vmatpush.msra.mxu0 0.0
    %856 = vmatpush.msra.mxu0 0.0
    %857 = vmatpush.msra.mxu0 0.0
    %858 = vmatpush.msra.mxu0 %v838
    %859 = vmatpush.msra.mxu0 %v836
    %860 = vmatpush.msra.mxu0 %v834
    %861 = vmatpush.msra.mxu0 %v832
    %862 = vmatmul.f32.gmra.mxu0 %v844
    %v863 = vpop.f32.mrf.mxu0
    %v864 = vadd.f32 0.0, %v863
    %865 = vdwg.mxu0
    %866 = vrot.lane.b32.xlu0 %v552, 64
    %v867 = vpop.permute.xlu0 %866
    %868 = vrot.lane.b32.xlu0 %v553, 64
    %v869 = vpop.permute.xlu0 %868
    %870 = vrot.lane.b32.xlu0 %v554, 64
    %v871 = vpop.permute.xlu0 %870
    %872 = vrot.lane.b32.xlu0 %v555, 64
    %v873 = vpop.permute.xlu0 %872
    %v879 = vsel %vm640, %v792, 0
    %881 = vmatpush.msra.mxu0 0.0
    %882 = vmatpush.msra.mxu0 0.0
    %883 = vmatpush.msra.mxu0 0.0
    %884 = vmatpush.msra.mxu0 0.0
    %885 = vmatpush.msra.mxu0 0.0
    %886 = vmatpush.msra.mxu0 0.0
    %887 = vmatpush.msra.mxu0 0.0
    %888 = vmatpush.msra.mxu0 0.0
    %889 = vmatpush.msra.mxu0 0.0
    %890 = vmatpush.msra.mxu0 0.0
    %891 = vmatpush.msra.mxu0 0.0
    %892 = vmatpush.msra.mxu0 0.0
    %893 = vmatpush.msra.mxu0 %v873
    %894 = vmatpush.msra.mxu0 %v871
    %895 = vmatpush.msra.mxu0 %v869
    %896 = vmatpush.msra.mxu0 %v867
    %897 = vmatmul.f32.gmra.mxu0 %v879
    %v898 = vpop.f32.mrf.mxu0
    %v899 = vadd.f32 %v864, %v898
    %900 = vdwg.mxu0
    %901 = vrot.lane.b32.xlu0 %v623, 32
    %v902 = vpop.permute.xlu0 %901
    %v904 = vadd.f32 %v899, %v902
    %v905 = vlaneseq
    %v906 = vand.u32 %v905, 127
    %vm907 = vcmp.ge.s32.totalorder %v906, 16
    %v908 = vmin.f32 %v904, 5.0
    %v909 = vsel %vm907, %v908, %v904
    %910 = vst.msk [vmem:[%s4] sm:$0x3] %vm748, %v909
    // Predicated region
    $region22: #{mlc_encoder_y.1} parent=1 // pred_check
      _
    $region23: #{mlc_encoder_y.1} parent=1 // pred_check_branch
      %912 = sbr.rel (0) target = $region25
    $region24: #{mlc_encoder_y.1} parent=1 // pred_region
      _
    $region25: #{mlc_encoder_y.1} parent=1 // pred_fallthru
      _
    // Predicated region
    $region26: #{mlc_encoder_y.1} parent=1 // pred_check
      _
    $region27: #{mlc_encoder_y.1} parent=1 // pred_check_branch
      %914 = sbr.rel (0) target = $region29
    $region28: #{mlc_encoder_y.1} parent=1 // pred_region
      _
    $region29: #{mlc_encoder_y.1} parent=1 // pred_fallthru
      _
    %915 = vsyncpa [#allocation3], 1

</llo_original>
